<compile_context>
chip_gen: v7x
topology: tpu7x:2x2x1
jax: 0.10.0
libtpu: 0.0.40
codegen_flags: <defaults>
</compile_context>

<pallas_src>
import jax
import jax.numpy as jnp
from jax.experimental import pallas as pl
from jax.experimental.pallas import tpu as pltpu


def _expansion_kernel(x_ref, w_ref, b_ref, o_ref):
    # x_ref: (1, Hin+2, Win+2, Cin)    zero-padded ORIGINAL-resolution image
    # w_ref: (9*Cin, 4*Cout)           phase-packed, BN-scaled conv weights
    # b_ref: (1, 4*Cout)               phase-packed folded bias
    # o_ref: (1, tile_h*Win, 4*Cout)   one output row tile, phases packed last
    win = x_ref.shape[2] - 2
    cin = x_ref.shape[3]
    tile_h = o_ref.shape[1] // win

    t = pl.program_id(1)
    row0 = pl.multiple_of(t * tile_h, tile_h)

    # im2col: 9 shifted (tile_h, Win, Cin) windows of the padded image,
    # concatenated along K -> one (tile_h*Win, 9*Cin) patch matrix.
    patches = []
    for r in range(3):
        for c in range(3):
            blk = x_ref[0, pl.ds(row0 + r, tile_h), c:c + win, :]
            patches.append(blk.reshape(tile_h * win, cin))
    patch = jnp.concatenate(patches, axis=1)

    # Single MXU matmul computes all 4 sub-pixel phases at once.
    acc = jnp.dot(patch, w_ref[...], preferred_element_type=jnp.float32)
    y = jnp.maximum(acc + b_ref[...], 0.0)   # folded BN bias + ReLU
    o_ref[0] = y.astype(o_ref.dtype)


def expansion_unit_forward(x_nchw, conv_w, conv_b, bn_gamma, bn_beta,
                           bn_mean, bn_var, eps=1e-5):
    """Forward pass of expansion_unit. Input/Output in NCHW (PyTorch layout)."""
    N, Cin, Hin, Win = x_nchw.shape
    Cout = conv_w.shape[0]
    Hout, Wout = 2 * Hin, 2 * Win

    # --- fold BatchNorm (inference) into conv weights / bias -----------------
    scale = bn_gamma / jnp.sqrt(bn_var + eps)                 # (Cout,)
    bias = bn_beta + (conv_b - bn_mean) * scale               # (Cout,)
    # (Cout, Cin, 3, 3) -> (3, 3, Cin, Cout), per-output-channel scale folded.
    w = jnp.transpose(conv_w, (2, 3, 1, 0)).astype(jnp.float32) * scale

    # --- sub-pixel (phase) packing of the weights ----------------------------
    # Output pixel (2i+p, 2j+q) only sees original pixels inside the 3x3
    # padded window rooted at (i, j); original tap (dy, dx) maps to window
    # offset (row_map[p][dy+1], col_map[q][dx+1]).
    row_map = ((0, 1, 1), (1, 1, 2))
    col_map = ((0, 1, 1), (1, 1, 2))
    w_big = jnp.zeros((9, Cin, 4, Cout), jnp.float32)
    for p in range(2):
        for q in range(2):
            for dy in range(3):
                for dx in range(3):
                    s = row_map[p][dy] * 3 + col_map[q][dx]
                    w_big = w_big.at[s, :, p * 2 + q, :].add(w[dy, dx])
    w_big = w_big.reshape(9 * Cin, 4 * Cout)
    b_big = jnp.tile(bias, 4).astype(jnp.float32)[None, :]    # (1, 4*Cout)

    # --- input: NCHW -> NHWC at ORIGINAL resolution, zero-pad H/W by 1 -------
    x_nhwc = jnp.transpose(x_nchw, (0, 2, 3, 1)).astype(jnp.float32)
    x_pad = jnp.pad(x_nhwc, ((0, 0), (1, 1), (1, 1), (0, 0)))

    # Row tiling: more grid steps -> real double-buffering of the output and a
    # bounded per-step VMEM footprint (important for large images on v7x).
    tile_h = 8 if Hin % 8 == 0 else Hin
    n_tiles = Hin // tile_h

    out_flat = pl.pallas_call(
        _expansion_kernel,
        out_shape=jax.ShapeDtypeStruct((N, Hin * Win, 4 * Cout), jnp.float32),
        grid=(N, n_tiles),
        in_specs=[
            # Full padded image; block index constant along the row-tile axis,
            # so it is DMA'd once per image and re-used by every row tile.
            pl.BlockSpec((1, Hin + 2, Win + 2, Cin), lambda n, t: (n, 0, 0, 0)),
            pl.BlockSpec((9 * Cin, 4 * Cout), lambda n, t: (0, 0)),
            pl.BlockSpec((1, 4 * Cout), lambda n, t: (0, 0)),
        ],
        out_specs=pl.BlockSpec((1, tile_h * Win, 4 * Cout),
                               lambda n, t: (n, t, 0)),
        compiler_params=pltpu.CompilerParams(
            dimension_semantics=("parallel", "parallel")),
    )(x_pad, w_big, b_big)

    # De-interleave the 4 phases with one small XLA transpose:
    # (N, Hin*Win, 4*Cout) -> (N, Cout, 2*Hin, 2*Win)  (NCHW)
    y = out_flat.reshape(N, Hin, Win, 2, 2, Cout)
    y = jnp.transpose(y, (0, 5, 1, 3, 2, 4))
    return y.reshape(N, Cout, Hout, Wout)


def _reference(x_nchw, conv_w, conv_b, bn_gamma, bn_beta, bn_mean, bn_var,
               eps=1e-5):
    """Plain-JAX reference (nearest upsample + lax conv) for validation."""
    x_up = jnp.repeat(jnp.repeat(x_nchw, 2, axis=2), 2, axis=3)
    y = jax.lax.conv_general_dilated(
        x_up, conv_w, window_strides=(1, 1), padding="SAME",
        dimension_numbers=("NCHW", "OIHW", "NCHW"))
    y = y + conv_b[None, :, None, None]
    y = (y - bn_mean[None, :, None, None]) / jnp.sqrt(
        bn_var[None, :, None, None] + eps)
    y = y * bn_gamma[None, :, None, None] + bn_beta[None, :, None, None]
    return jnp.maximum(y, 0.0)


if __name__ == "__main__":
    in_ch, out_ch = 4, 8
    N, Hin, Win = 2, 16, 16

    key = jax.random.PRNGKey(0)
    kx, kw, kb, kg, kbeta, km, kv = jax.random.split(key, 7)

    x = jax.random.normal(kx, (N, in_ch, Hin, Win), dtype=jnp.float32)

    # Deterministic synthetic parameters (shapes from the module's __init__).
    conv_w = jax.random.normal(kw, (out_ch, in_ch, 3, 3), dtype=jnp.float32) * 0.1
    conv_b = jax.random.normal(kb, (out_ch,), dtype=jnp.float32) * 0.1
    bn_gamma = 1.0 + 0.1 * jax.random.normal(kg, (out_ch,), dtype=jnp.float32)
    bn_beta = 0.1 * jax.random.normal(kbeta, (out_ch,), dtype=jnp.float32)
    bn_mean = 0.1 * jax.random.normal(km, (out_ch,), dtype=jnp.float32)
    bn_var = jnp.abs(jax.random.normal(kv, (out_ch,), dtype=jnp.float32)) + 0.5

    fwd = jax.jit(expansion_unit_forward)
    out = fwd(x, conv_w, conv_b, bn_gamma, bn_beta, bn_mean, bn_var)
    out = jax.block_until_ready(out)

    ref = _reference(x, conv_w, conv_b, bn_gamma, bn_beta, bn_mean, bn_var)
    assert out.shape == (N, out_ch, 2 * Hin, 2 * Win)
    assert jnp.allclose(out, ref, atol=1e-4, rtol=1e-4), "mismatch vs reference"

    print("KERNEL_OK")
</pallas_src>

<mosaic_0001>
module attributes {stable_mosaic.version = 11 : i64} {
  func.func @_expansion_kernel(%arg0: i32, %arg1: i32, %arg2: memref<1x18x18x4xf32, #tpu.memory_space<vmem>>, %arg3: memref<36x32xf32, #tpu.memory_space<vmem>>, %arg4: memref<1x32xf32, #tpu.memory_space<vmem>>, %arg5: memref<1x128x32xf32, #tpu.memory_space<vmem>>) attributes {dimension_semantics = [#tpu.dimension_semantics<parallel>, #tpu.dimension_semantics<parallel>], iteration_bounds = array<i64: 2, 2>, scalar_prefetch = 0 : i64, scratch_operands = 0 : i64, tpu.core_type = #tpu.core_type<tc>, window_params = [{transform_indices = @transform_0, window_bounds = array<i64: 1, 18, 18, 4>}, {pipeline_mode = #tpu.pipeline_mode<synchronous>, transform_indices = @transform_1, window_bounds = array<i64: 36, 32>}, {pipeline_mode = #tpu.pipeline_mode<synchronous>, transform_indices = @transform_2, window_bounds = array<i64: 1, 32>}, {transform_indices = @transform_3, window_bounds = array<i64: 1, 128, 32>}]} {
    %c8_i32 = arith.constant 8 : i32
    %0 = arith.muli %arg1, %c8_i32 : i32
    %1 = tpu.assume_multiple %0, 8 : i32
    %c0_i32 = arith.constant 0 : i32
    %2 = arith.addi %1, %c0_i32 : i32
    %c0 = arith.constant 0 : index
    %3 = arith.index_cast %2 : i32 to index
    %c0_0 = arith.constant 0 : index
    %c0_1 = arith.constant 0 : index
    %4 = vector.load %arg2[%c0, %3, %c0_0, %c0_1] : memref<1x18x18x4xf32, #tpu.memory_space<vmem>>, vector<1x8x16x4xf32>
    %5 = vector.shape_cast %4 : vector<1x8x16x4xf32> to vector<8x16x4xf32>
    %6 = vector.shape_cast %5 : vector<8x16x4xf32> to vector<128x4xf32>
    %c0_i32_2 = arith.constant 0 : i32
    %7 = arith.addi %1, %c0_i32_2 : i32
    %c0_3 = arith.constant 0 : index
    %8 = arith.index_cast %7 : i32 to index
    %c1 = arith.constant 1 : index
    %c0_4 = arith.constant 0 : index
    %9 = vector.load %arg2[%c0_3, %8, %c1, %c0_4] : memref<1x18x18x4xf32, #tpu.memory_space<vmem>>, vector<1x8x16x4xf32>
    %10 = vector.shape_cast %9 : vector<1x8x16x4xf32> to vector<8x16x4xf32>
    %11 = vector.shape_cast %10 : vector<8x16x4xf32> to vector<128x4xf32>
    %c0_i32_5 = arith.constant 0 : i32
    %12 = arith.addi %1, %c0_i32_5 : i32
    %c0_6 = arith.constant 0 : index
    %13 = arith.index_cast %12 : i32 to index
    %c2 = arith.constant 2 : index
    %c0_7 = arith.constant 0 : index
    %14 = vector.load %arg2[%c0_6, %13, %c2, %c0_7] : memref<1x18x18x4xf32, #tpu.memory_space<vmem>>, vector<1x8x16x4xf32>
    %15 = vector.shape_cast %14 : vector<1x8x16x4xf32> to vector<8x16x4xf32>
    %16 = vector.shape_cast %15 : vector<8x16x4xf32> to vector<128x4xf32>
    %c1_i32 = arith.constant 1 : i32
    %17 = arith.addi %1, %c1_i32 : i32
    %c0_8 = arith.constant 0 : index
    %18 = arith.index_cast %17 : i32 to index
    %c0_9 = arith.constant 0 : index
    %c0_10 = arith.constant 0 : index
    %19 = vector.load %arg2[%c0_8, %18, %c0_9, %c0_10] : memref<1x18x18x4xf32, #tpu.memory_space<vmem>>, vector<1x8x16x4xf32>
    %20 = vector.shape_cast %19 : vector<1x8x16x4xf32> to vector<8x16x4xf32>
    %21 = vector.shape_cast %20 : vector<8x16x4xf32> to vector<128x4xf32>
    %c1_i32_11 = arith.constant 1 : i32
    %22 = arith.addi %1, %c1_i32_11 : i32
    %c0_12 = arith.constant 0 : index
    %23 = arith.index_cast %22 : i32 to index
    %c1_13 = arith.constant 1 : index
    %c0_14 = arith.constant 0 : index
    %24 = vector.load %arg2[%c0_12, %23, %c1_13, %c0_14] : memref<1x18x18x4xf32, #tpu.memory_space<vmem>>, vector<1x8x16x4xf32>
    %25 = vector.shape_cast %24 : vector<1x8x16x4xf32> to vector<8x16x4xf32>
    %26 = vector.shape_cast %25 : vector<8x16x4xf32> to vector<128x4xf32>
    %c1_i32_15 = arith.constant 1 : i32
    %27 = arith.addi %1, %c1_i32_15 : i32
    %c0_16 = arith.constant 0 : index
    %28 = arith.index_cast %27 : i32 to index
    %c2_17 = arith.constant 2 : index
    %c0_18 = arith.constant 0 : index
    %29 = vector.load %arg2[%c0_16, %28, %c2_17, %c0_18] : memref<1x18x18x4xf32, #tpu.memory_space<vmem>>, vector<1x8x16x4xf32>
    %30 = vector.shape_cast %29 : vector<1x8x16x4xf32> to vector<8x16x4xf32>
    %31 = vector.shape_cast %30 : vector<8x16x4xf32> to vector<128x4xf32>
    %c2_i32 = arith.constant 2 : i32
    %32 = arith.addi %1, %c2_i32 : i32
    %c0_19 = arith.constant 0 : index
    %33 = arith.index_cast %32 : i32 to index
    %c0_20 = arith.constant 0 : index
    %c0_21 = arith.constant 0 : index
    %34 = vector.load %arg2[%c0_19, %33, %c0_20, %c0_21] : memref<1x18x18x4xf32, #tpu.memory_space<vmem>>, vector<1x8x16x4xf32>
    %35 = vector.shape_cast %34 : vector<1x8x16x4xf32> to vector<8x16x4xf32>
    %36 = vector.shape_cast %35 : vector<8x16x4xf32> to vector<128x4xf32>
    %c2_i32_22 = arith.constant 2 : i32
    %37 = arith.addi %1, %c2_i32_22 : i32
    %c0_23 = arith.constant 0 : index
    %38 = arith.index_cast %37 : i32 to index
    %c1_24 = arith.constant 1 : index
    %c0_25 = arith.constant 0 : index
    %39 = vector.load %arg2[%c0_23, %38, %c1_24, %c0_25] : memref<1x18x18x4xf32, #tpu.memory_space<vmem>>, vector<1x8x16x4xf32>
    %40 = vector.shape_cast %39 : vector<1x8x16x4xf32> to vector<8x16x4xf32>
    %41 = vector.shape_cast %40 : vector<8x16x4xf32> to vector<128x4xf32>
    %c2_i32_26 = arith.constant 2 : i32
    %42 = arith.addi %1, %c2_i32_26 : i32
    %c0_27 = arith.constant 0 : index
    %43 = arith.index_cast %42 : i32 to index
    %c2_28 = arith.constant 2 : index
    %c0_29 = arith.constant 0 : index
    %44 = vector.load %arg2[%c0_27, %43, %c2_28, %c0_29] : memref<1x18x18x4xf32, #tpu.memory_space<vmem>>, vector<1x8x16x4xf32>
    %45 = vector.shape_cast %44 : vector<1x8x16x4xf32> to vector<8x16x4xf32>
    %46 = vector.shape_cast %45 : vector<8x16x4xf32> to vector<128x4xf32>
    %47 = tpu.concatenate %6, %11, %16, %21, %26, %31, %36, %41, %46 in 1 : vector<128x4xf32>, vector<128x4xf32>, vector<128x4xf32>, vector<128x4xf32>, vector<128x4xf32>, vector<128x4xf32>, vector<128x4xf32>, vector<128x4xf32>, vector<128x4xf32> -> vector<128x36xf32>
    %c0_30 = arith.constant 0 : index
    %c0_31 = arith.constant 0 : index
    %48 = vector.load %arg3[%c0_30, %c0_31] : memref<36x32xf32, #tpu.memory_space<vmem>>, vector<36x32xf32>
    %cst = arith.constant dense<0.000000e+00> : vector<128x32xf32>
    %49 = tpu.matmul %47, %48, %cst {dimension_numbers = #tpu.dot_dimension_numbers<[1], [0], [0], [1], [0, 0, 1, 1], [], []>} : vector<128x36xf32>, vector<36x32xf32>, vector<128x32xf32> -> vector<128x32xf32>
    %c0_32 = arith.constant 0 : index
    %c0_33 = arith.constant 0 : index
    %50 = vector.load %arg4[%c0_32, %c0_33] : memref<1x32xf32, #tpu.memory_space<vmem>>, vector<1x32xf32>
    %51 = vector.broadcast %50 : vector<1x32xf32> to vector<128x32xf32>
    %52 = arith.addf %49, %51 : vector<128x32xf32>
    %cst_34 = arith.constant 0.000000e+00 : f32
    %53 = vector.broadcast %cst_34 : f32 to vector<128x32xf32>
    %54 = arith.maximumf %52, %53 : vector<128x32xf32>
    %c0_35 = arith.constant 0 : index
    %c0_36 = arith.constant 0 : index
    %c0_37 = arith.constant 0 : index
    %55 = vector.load %arg5[%c0_35, %c0_36, %c0_37] : memref<1x128x32xf32, #tpu.memory_space<vmem>>, vector<1x128x32xf32>
    %56 = vector.shape_cast %55 : vector<1x128x32xf32> to vector<128x32xf32>
    %57 = vector.shape_cast %54 : vector<128x32xf32> to vector<1x128x32xf32>
    tpu.vector_store %arg5[%c0_35, %c0_36, %c0_37], %57 {strides = array<i32>} : memref<1x128x32xf32, #tpu.memory_space<vmem>>, vector<1x128x32xf32>,
    return
  }
  func.func @transform_0(%arg0: i32, %arg1: i32) -> (i32, i32, i32, i32) {
    %c0_i32 = arith.constant 0 : i32
    %c0_i32_0 = arith.constant 0 : i32
    %c0_i32_1 = arith.constant 0 : i32
    %c0_i32_2 = arith.constant 0 : i32
    return %arg0, %c0_i32, %c0_i32_0, %c0_i32_1 : i32, i32, i32, i32
  }
  func.func @transform_1(%arg0: i32, %arg1: i32) -> (i32, i32) {
    %c0_i32 = arith.constant 0 : i32
    %c0_i32_0 = arith.constant 0 : i32
    %c0_i32_1 = arith.constant 0 : i32
    return %c0_i32, %c0_i32_0 : i32, i32
  }
  func.func @transform_2(%arg0: i32, %arg1: i32) -> (i32, i32) {
    %c0_i32 = arith.constant 0 : i32
    %c0_i32_0 = arith.constant 0 : i32
    %c0_i32_1 = arith.constant 0 : i32
    return %c0_i32, %c0_i32_0 : i32, i32
  }
  func.func @transform_3(%arg0: i32, %arg1: i32) -> (i32, i32, i32) {
    %c0_i32 = arith.constant 0 : i32
    %c0_i32_0 = arith.constant 0 : i32
    return %arg0, %arg1, %c0_i32 : i32, i32, i32
  }
}

</mosaic_0001>

<llo_original>
// kernel: tile.8
$region0: #{tile.8}
  #allocation0 [shape = 's32[1]{0}', space=sflag, size = 0x4, scoped, tag = 'scoped memory for tile.8']
  %s0 = inlined_call_operand.vmem [shape: f32[8], index: 0, kind: input, shape index: {}]
  %s1 = inlined_call_operand.vmem [shape: f32[4,8], index: 1, kind: output, shape index: {}]
  // Predicated region
  $region2: #{tile.8} parent=0 // pred_check
    _
  $region3: #{tile.8} parent=0 // pred_check_branch
    %3 = sbr.rel (0) target = $region5
  $region4: #{tile.8} parent=0 // pred_region
    _
  $region5: #{tile.8} parent=0 // pred_fallthru
    _
  %v4 = vld [vmem:[%s0] ss:$0 sm:$0xff]
  %5 = vst [vmem:[%s1] sm:$0xf] %v4

// kernel: tile.9
$region0: #{tile.9}
  %s0 = inlined_call_operand.vmem [shape: f32[4,8], index: 0, kind: input, shape index: {}]
  %s1 = inlined_call_operand.vmem [shape: f32[1,32], index: 1, kind: output, shape index: {}]
  $region1: #{tile.9} parent=0
    #allocation0 [shape = 'u8[4096]{0}', space=vmem, size = 0x1000, scoped, tag = 'scoped mem for output reshape']
    #allocation1 [shape = 'u8[4096]{0}', space=vmem, size = 0x1000, scoped, tag = 'scoped mem for input reshape']
    %s3 = sshllo.u32 0, 4
    %v4 = vld [vmem:[%s0] sm:%s3]
    %5 = vst [vmem:[#allocation1] sm:%s3] %v4
    %v6 = vld [vmem:[#allocation1] sm:$0x1]
    %vm7 = vcmask 64512
    %8 = vst.msk [vmem:[#allocation0] sm:$0x1] %vm7, %v6
    %s9 = scalar_lea.vmem [#allocation1], 3
    %v10 = vld [vmem:[%s9] sm:$0x1]
    %11 = vrot.lane.b32.xlu0 %v10, 24
    %v12 = vpop.permute.xlu0 %11
    %vm13 = vcmask 261312
    %14 = vst.msk [vmem:[#allocation0] sm:$0x1] %vm13, %v12
    %s15 = scalar_lea.vmem [#allocation1], 2
    %v16 = vld [vmem:[%s15] sm:$0x1]
    %17 = vrot.lane.b32.xlu0 %v16, 16
    %v18 = vpop.permute.xlu0 %17
    %vm19 = vcmask 195712
    %20 = vst.msk [vmem:[#allocation0] sm:$0x1] %vm19, %v18
    %s21 = scalar_lea.vmem [#allocation1], 1
    %v22 = vld [vmem:[%s21] sm:$0x1]
    %23 = vrot.lane.b32.xlu0 %v22, 8
    %v24 = vpop.permute.xlu0 %23
    %vm25 = vcmask 130112
    %26 = vst.msk [vmem:[#allocation0] sm:$0x1] %vm25, %v24
    %s28 = sshllo.u32 0, 1
    %v30 = vld [vmem:[#allocation0] sm:%s28]
    %s31 = sshllo.u32 0, 1
    %32 = vst [vmem:[%s1] sm:%s31] %v30

// kernel: expansion_unit_forward.1
$region0: #{expansion_unit_forward.1}
  #allocation0 [shape = 'u32[]', space=smem, size = 0x4, offset = 0x4, fixed_abs, tag = 'smem constant byte address 0x4 - core index']
  #allocation1 [shape = 'u32[144,128]{1,0:T(1,128)}', space=vmem, size = 0x12000, scoped, tag = 'internal scratch']
  %s0 = inlined_call_operand.vmem [shape: f32[2,18,18,4], index: 0, kind: input, shape index: {}]
  %s1 = inlined_call_operand.vmem [shape: f32[36,32], index: 1, kind: input, shape index: {}]
  %s2 = inlined_call_operand.vmem [shape: f32[1,32], index: 2, kind: input, shape index: {}]
  %s3 = inlined_call_operand.vmem [shape: f32[2,256,32], index: 3, kind: output, shape index: {}]
  %s4 = sld [smem:[#allocation0]]
  $region45: #{expansion_unit_forward.1} parent=0
    _
  %s6 = ssub.s32 1, %s4
  %s7 = scalar_select 0, %s6, %s4
  loop: start=0, step=1, limit=6
  $region2: #{expansion_unit_forward.1} parent=0 // loop_pre_header
    _
  $region3: #{expansion_unit_forward.1} parent=0 // loop_header
    %s9 = sphi 0, %s13
    %p10 = scmp.ge.s32.totalorder %s9, 6
    %s16 = sphi 0, %s28
    %s17 = sphi 0, %s24
    %s18 = sphi 0, %s16
    %s19 = sphi 0, %s17
    %s20 = sphi 0, %s18
    %s21 = sphi 0, %s19
    %s31 = sphi 0, %s33
    %s34 = sphi 0, %s31
    %s35 = sphi 0, %s34
    %s51 = sphi 0, %s35
    %s55 = sphi 0, %s55
    %s57 = sphi 0, %s55
    %s58 = sphi 0, %s57
    %s72 = sphi 0, %s58
    %s76 = sphi 0, %s76
    %s78 = sphi 0, %s76
    %s79 = sphi 0, %s78
    %s93 = sphi 0, %s79
    %s101 = sphi 0, %s103
    %s104 = sphi 0, %s101
    %s105 = sphi 0, %s104
    %s121 = sphi 0, %s105
  $region4: #{expansion_unit_forward.1} parent=0 // loop_header_branch
    %12 = sbr.rel (%p10) target = $region8
  $region5: #{expansion_unit_forward.1} parent=0 // loop_body
    %s14 = ssub.s32 %s9, 1
    %s15 = ssub.s32 %s9, 2
    %s22 = sadd.s32 1, %s17
    %p23 = scmp.ge.s32.totalorder %s22, 2
    %s24 = scalar_select %p23, 0, %s22
    %s25 = sadd.s32 1, %s16
    %s26 = scalar_select %p23, %s25, %s16
    %p27 = scmp.ge.s32.totalorder %s26, 2
    %s28 = scalar_select %p27, 0, %s26
    %s29 = ssub.s32 %s16, %s28
    %p30 = scmp.eq.s32.totalorder %s29, 0
    %s32 = sadd.s32 %s31, 1
    %s33 = scalar_select %p30, %s31, %s32
    %p36 = pneg %p30
    %p37 = scmp.eq.s32.totalorder %s9, 3
    %p38 = por %p36, %p37
    %p39 = scmp.ne.s32.totalorder %s31, %s34
    %p40 = scmp.eq.s32.totalorder %s9, 0
    %p41 = por %p39, %p40
    %p42 = scmp.ne.s32.totalorder %s31, %s34
    %p43 = scmp.eq.s32.totalorder %s14, 3
    %p44 = por %p42, %p43
    %p45 = scmp.ne.s32.totalorder %s34, %s35
    %p46 = scmp.eq.s32.totalorder %s14, 0
    %p47 = por %p45, %p46
    %p48 = scmp.ne.s32.totalorder %s34, %s35
    %p49 = scmp.eq.s32.totalorder %s15, 3
    %p50 = por %p48, %p49
    %p52 = scmp.ne.s32.totalorder %s35, %s51
    %p53 = scmp.eq.s32.totalorder %s15, 0
    %p54 = por %p52, %p53
    %s56 = sadd.s32 %s55, 1
    %p59 = scmp.eq.s32.totalorder %s9, 3
    %p60 = scmp.ne.s32.totalorder %s55, %s57
    %p61 = scmp.eq.s32.totalorder %s9, 0
    %p62 = por %p60, %p61
    %p63 = scmp.ne.s32.totalorder %s55, %s57
    %p64 = scmp.eq.s32.totalorder %s14, 3
    %p65 = por %p63, %p64
    %p66 = scmp.ne.s32.totalorder %s57, %s58
    %p67 = scmp.eq.s32.totalorder %s14, 0
    %p68 = por %p66, %p67
    %p69 = scmp.ne.s32.totalorder %s57, %s58
    %p70 = scmp.eq.s32.totalorder %s15, 3
    %p71 = por %p69, %p70
    %p73 = scmp.ne.s32.totalorder %s58, %s72
    %p74 = scmp.eq.s32.totalorder %s15, 0
    %p75 = por %p73, %p74
    %s77 = sadd.s32 %s76, 1
    %p80 = scmp.eq.s32.totalorder %s9, 3
    %p81 = scmp.ne.s32.totalorder %s76, %s78
    %p82 = scmp.eq.s32.totalorder %s9, 0
    %p83 = por %p81, %p82
    %p84 = scmp.ne.s32.totalorder %s76, %s78
    %p85 = scmp.eq.s32.totalorder %s14, 3
    %p86 = por %p84, %p85
    %p87 = scmp.ne.s32.totalorder %s78, %s79
    %p88 = scmp.eq.s32.totalorder %s14, 0
    %p89 = por %p87, %p88
    %p90 = scmp.ne.s32.totalorder %s78, %s79
    %p91 = scmp.eq.s32.totalorder %s15, 3
    %p92 = por %p90, %p91
    %p94 = scmp.ne.s32.totalorder %s79, %s93
    %p95 = scmp.eq.s32.totalorder %s15, 0
    %p96 = por %p94, %p95
    %s97 = ssub.s32 %s16, %s28
    %s98 = ssub.s32 %s17, %s24
    %s99 = sor.u32 %s97, %s98
    %p100 = scmp.eq.s32.totalorder %s99, 0
    %s102 = sadd.s32 %s101, 1
    %s103 = scalar_select %p100, %s101, %s102
    %p106 = pneg %p100
    %p107 = scmp.eq.s32.totalorder %s9, 3
    %p108 = por %p106, %p107
    %p109 = scmp.ne.s32.totalorder %s101, %s104
    %p110 = scmp.eq.s32.totalorder %s9, 0
    %p111 = por %p109, %p110
    %p112 = scmp.ne.s32.totalorder %s101, %s104
    %p113 = scmp.eq.s32.totalorder %s14, 3
    %p114 = por %p112, %p113
    %p115 = scmp.ne.s32.totalorder %s104, %s105
    %p116 = scmp.eq.s32.totalorder %s14, 0
    %p117 = por %p115, %p116
    %p118 = scmp.ne.s32.totalorder %s104, %s105
    %p119 = scmp.eq.s32.totalorder %s15, 3
    %p120 = por %p118, %p119
    %p122 = scmp.ne.s32.totalorder %s105, %s121
    %p123 = scmp.eq.s32.totalorder %s15, 0
    %p124 = por %p122, %p123
    %p125 = scmp.le.s32.totalorder 1, %s9
    %p126 = scmp.lt.s32.totalorder %s9, 5
    %p127 = pnand %p125, %p126
    %p128 = pneg %p127
    // Predicated region
    $region9: #{expansion_unit_forward.1} parent=5 // pred_check
      _
    $region10: #{expansion_unit_forward.1} parent=5 // pred_check_branch
      %130 = sbr.rel (%p127) target = $region12
    $region11: #{expansion_unit_forward.1} parent=5 // pred_region
      %s131 = ssub.s32 %s9, 1
      // Predicated region
      $region13: #{expansion_unit_forward.1} parent=11 // pred_check
        %p132 = pneg %p68
      $region14: #{expansion_unit_forward.1} parent=11 // pred_check_branch
        %134 = sbr.rel (%p132) target = $region16
      $region15: #{expansion_unit_forward.1} parent=11 // pred_region
        _
      $region16: #{expansion_unit_forward.1} parent=11 // pred_fallthru
        _
      // Predicated region
      $region17: #{expansion_unit_forward.1} parent=11 // pred_check
        %p135 = pneg %p89
      $region18: #{expansion_unit_forward.1} parent=11 // pred_check_branch
        %137 = sbr.rel (%p135) target = $region20
      $region19: #{expansion_unit_forward.1} parent=11 // pred_region
        _
      $region20: #{expansion_unit_forward.1} parent=11 // pred_fallthru
        _
    $region12: #{expansion_unit_forward.1} parent=5 // pred_fallthru
      _
    %p138 = scmp.lt.s32.totalorder %s9, 4
    // Predicated region
    $region21: #{expansion_unit_forward.1} parent=5 // pred_check
      %p139 = pneg %p138
    $region22: #{expansion_unit_forward.1} parent=5 // pred_check_branch
      %141 = sbr.rel (%p139) target = $region24
    $region23: #{expansion_unit_forward.1} parent=5 // pred_region
      // Predicated region
      $region25: #{expansion_unit_forward.1} parent=23 // pred_check
        %p142 = pneg %p41
      $region26: #{expansion_unit_forward.1} parent=23 // pred_check_branch
        %144 = sbr.rel (%p142) target = $region28
      $region27: #{expansion_unit_forward.1} parent=23 // pred_region
        %p145 = scmp.lt.s32.totalorder %s16, 1
        %s146 = scalar_select %p145, %s16, 1
        %s147 = smul.addr %s146, 54
        %s148 = smul.addr %s147, 8
        %s149 = scalar_lea.vmem %s0, %s148
      $region28: #{expansion_unit_forward.1} parent=23 // pred_fallthru
        _
    $region24: #{expansion_unit_forward.1} parent=5 // pred_fallthru
      _
    %p150 = scmp.le.s32.totalorder 1, %s9
    %p151 = scmp.lt.s32.totalorder %s9, 5
    %p152 = pnand %p150, %p151
    %p153 = pneg %p152
    // Predicated region
    $region29: #{expansion_unit_forward.1} parent=5 // pred_check
      _
    $region30: #{expansion_unit_forward.1} parent=5 // pred_check_branch
      %155 = sbr.rel (%p152) target = $region32
    $region31: #{expansion_unit_forward.1} parent=5 // pred_region
      %s156 = ssub.s32 %s9, 1
      %p157 = scmp.lt.s32.totalorder %s18, 1
      %s158 = scalar_select %p157, %s18, 1
      %s159 = smul.addr %s158, 54
      %s160 = smul.addr %s159, 8
      %s161 = scalar_lea.vmem %s0, %s160
      %p162 = pneg %p47
      %p163 = pneg %p44
      %p164 = pneg %p68
      %p165 = pneg %p65
      %p166 = pneg %p89
      %p167 = pneg %p86
      %p168 = pneg %p117
      %p169 = pneg %p114
      %s170 = smul.u32 16, %s19
      %p171 = scmp.lt.s32.totalorder %s18, 1
      %s172 = scalar_select %p171, %s18, 1
      %p173 = scmp.lt.s32.totalorder %s170, 31
      %s174 = scalar_select %p173, %s170, 31
      %s175 = smul.addr %s172, 32
      %s176 = sadd.s32 %s174, %s175
      %s177 = smul.addr %s176, 8
      %s178 = scalar_lea.vmem %s3, %s177
      %p179 = scmp.lt.s32.totalorder %s18, 1
      %s180 = scalar_select %p179, %s18, 1
      %s181 = smul.addr %s180, 54
      %s182 = smul.addr %s181, 8
      %s183 = scalar_lea.vmem %s0, %s182
      %s184 = smul.u32 16, %s19
      %p185 = scmp.lt.s32.totalorder %s18, 1
      %s186 = scalar_select %p185, %s18, 1
      %p187 = scmp.lt.s32.totalorder %s184, 31
      %s188 = scalar_select %p187, %s184, 31
      %s189 = smul.addr %s186, 32
      %s190 = sadd.s32 %s188, %s189
      %s191 = smul.addr %s190, 8
      %s192 = scalar_lea.vmem %s3, %s191
      %s193 = smul.u32 16, %s19
      %s194 = smul.u32 %s19, 8
      %s195 = smul.u32 %s194, 24
      %s196 = scalar_lea.vmem %s183, %s195
      %v197 = vld [vmem:[%s196] sm:$0xff]
      %v198 = vld [vmem:[%s196 + $0x8] sm:$0xff]
      %v199 = vld [vmem:[%s196 + $0x18] sm:$0xff]
      %v200 = vld [vmem:[%s196 + $0x20] sm:$0xff]
      %v201 = vld [vmem:[%s196 + $0x30] sm:$0xff]
      %v202 = vld [vmem:[%s196 + $0x38] sm:$0xff]
      %v203 = vld [vmem:[%s196 + $0x48] sm:$0xff]
      %v204 = vld [vmem:[%s196 + $0x50] sm:$0xff]
      %v205 = vld [vmem:[%s196 + $0x60] sm:$0xff]
      %v206 = vld [vmem:[%s196 + $0x68] sm:$0xff]
      %v207 = vld [vmem:[%s196 + $0x78] sm:$0xff]
      %v208 = vld [vmem:[%s196 + $0x80] sm:$0xff]
      %v209 = vld [vmem:[%s196 + $0x90] sm:$0xff]
      %v210 = vld [vmem:[%s196 + $0x98] sm:$0xff]
      %v211 = vld [vmem:[%s196 + $0xa8] sm:$0xff]
      %v212 = vld [vmem:[%s196 + $0xb0] sm:$0xff]
      %v213 = vld [vmem:[%s196 + $0x1] sm:$0xff]
      %v214 = vld [vmem:[%s196 + $0x9] sm:$0xff]
      %v215 = vld [vmem:[%s196 + $0x19] sm:$0xff]
      %v216 = vld [vmem:[%s196 + $0x21] sm:$0xff]
      %v217 = vld [vmem:[%s196 + $0x31] sm:$0xff]
      %v218 = vld [vmem:[%s196 + $0x39] sm:$0xff]
      %v219 = vld [vmem:[%s196 + $0x49] sm:$0xff]
      %v220 = vld [vmem:[%s196 + $0x51] sm:$0xff]
      %v221 = vld [vmem:[%s196 + $0x61] sm:$0xff]
      %v222 = vld [vmem:[%s196 + $0x69] sm:$0xff]
      %v223 = vld [vmem:[%s196 + $0x79] sm:$0xff]
      %v224 = vld [vmem:[%s196 + $0x81] sm:$0xff]
      %v225 = vld [vmem:[%s196 + $0x91] sm:$0xff]
      %v226 = vld [vmem:[%s196 + $0x99] sm:$0xff]
      %v227 = vld [vmem:[%s196 + $0xa9] sm:$0xff]
      %v228 = vld [vmem:[%s196 + $0xb1] sm:$0xff]
      %v229 = vld [vmem:[%s196 + $0x2] sm:$0xff]
      %v230 = vld [vmem:[%s196 + $0xa] sm:$0xff]
      %v231 = vld [vmem:[%s196 + $0x1a] sm:$0xff]
      %v232 = vld [vmem:[%s196 + $0x22] sm:$0xff]
      %v233 = vld [vmem:[%s196 + $0x32] sm:$0xff]
      %v234 = vld [vmem:[%s196 + $0x3a] sm:$0xff]
      %v235 = vld [vmem:[%s196 + $0x4a] sm:$0xff]
      %v236 = vld [vmem:[%s196 + $0x52] sm:$0xff]
      %v237 = vld [vmem:[%s196 + $0x62] sm:$0xff]
      %v238 = vld [vmem:[%s196 + $0x6a] sm:$0xff]
      %v239 = vld [vmem:[%s196 + $0x7a] sm:$0xff]
      %v240 = vld [vmem:[%s196 + $0x82] sm:$0xff]
      %v241 = vld [vmem:[%s196 + $0x92] sm:$0xff]
      %v242 = vld [vmem:[%s196 + $0x9a] sm:$0xff]
      %v243 = vld [vmem:[%s196 + $0xaa] sm:$0xff]
      %v244 = vld [vmem:[%s196 + $0xb2] sm:$0xff]
      %s245 = sadd.s32 %s194, 1
      %s246 = smul.u32 %s245, 24
      %s247 = scalar_lea.vmem %s183, %s246
      %v248 = vld [vmem:[%s247] sm:$0xff]
      %v249 = vld [vmem:[%s247 + $0x8] sm:$0xff]
      %v250 = vld [vmem:[%s247 + $0x18] sm:$0xff]
      %v251 = vld [vmem:[%s247 + $0x20] sm:$0xff]
      %v252 = vld [vmem:[%s247 + $0x30] sm:$0xff]
      %v253 = vld [vmem:[%s247 + $0x38] sm:$0xff]
      %v254 = vld [vmem:[%s247 + $0x48] sm:$0xff]
      %v255 = vld [vmem:[%s247 + $0x50] sm:$0xff]
      %v256 = vld [vmem:[%s247 + $0x60] sm:$0xff]
      %v257 = vld [vmem:[%s247 + $0x68] sm:$0xff]
      %v258 = vld [vmem:[%s247 + $0x78] sm:$0xff]
      %v259 = vld [vmem:[%s247 + $0x80] sm:$0xff]
      %v260 = vld [vmem:[%s247 + $0x90] sm:$0xff]
      %v261 = vld [vmem:[%s247 + $0x98] sm:$0xff]
      %v262 = vld [vmem:[%s247 + $0xa8] sm:$0xff]
      %v263 = vld [vmem:[%s247 + $0xb0] sm:$0xff]
      %v264 = vld [vmem:[%s247 + $0x1] sm:$0xff]
      %v265 = vld [vmem:[%s247 + $0x9] sm:$0xff]
      %v266 = vld [vmem:[%s247 + $0x19] sm:$0xff]
      %v267 = vld [vmem:[%s247 + $0x21] sm:$0xff]
      %v268 = vld [vmem:[%s247 + $0x31] sm:$0xff]
      %v269 = vld [vmem:[%s247 + $0x39] sm:$0xff]
      %v270 = vld [vmem:[%s247 + $0x49] sm:$0xff]
      %v271 = vld [vmem:[%s247 + $0x51] sm:$0xff]
      %v272 = vld [vmem:[%s247 + $0x61] sm:$0xff]
      %v273 = vld [vmem:[%s247 + $0x69] sm:$0xff]
      %v274 = vld [vmem:[%s247 + $0x79] sm:$0xff]
      %v275 = vld [vmem:[%s247 + $0x81] sm:$0xff]
      %v276 = vld [vmem:[%s247 + $0x91] sm:$0xff]
      %v277 = vld [vmem:[%s247 + $0x99] sm:$0xff]
      %v278 = vld [vmem:[%s247 + $0xa9] sm:$0xff]
      %v279 = vld [vmem:[%s247 + $0xb1] sm:$0xff]
      %v280 = vld [vmem:[%s247 + $0x2] sm:$0xff]
      %v281 = vld [vmem:[%s247 + $0xa] sm:$0xff]
      %v282 = vld [vmem:[%s247 + $0x1a] sm:$0xff]
      %v283 = vld [vmem:[%s247 + $0x22] sm:$0xff]
      %v284 = vld [vmem:[%s247 + $0x32] sm:$0xff]
      %v285 = vld [vmem:[%s247 + $0x3a] sm:$0xff]
      %v286 = vld [vmem:[%s247 + $0x4a] sm:$0xff]
      %v287 = vld [vmem:[%s247 + $0x52] sm:$0xff]
      %v288 = vld [vmem:[%s247 + $0x62] sm:$0xff]
      %v289 = vld [vmem:[%s247 + $0x6a] sm:$0xff]
      %v290 = vld [vmem:[%s247 + $0x7a] sm:$0xff]
      %v291 = vld [vmem:[%s247 + $0x82] sm:$0xff]
      %v292 = vld [vmem:[%s247 + $0x92] sm:$0xff]
      %v293 = vld [vmem:[%s247 + $0x9a] sm:$0xff]
      %v294 = vld [vmem:[%s247 + $0xaa] sm:$0xff]
      %v295 = vld [vmem:[%s247 + $0xb2] sm:$0xff]
      %s296 = sadd.s32 %s194, 2
      %s297 = smul.u32 %s296, 24
      %s298 = scalar_lea.vmem %s183, %s297
      %v299 = vld [vmem:[%s298] sm:$0xff]
      %v300 = vld [vmem:[%s298 + $0x8] sm:$0xff]
      %v301 = vld [vmem:[%s298 + $0x18] sm:$0xff]
      %v302 = vld [vmem:[%s298 + $0x20] sm:$0xff]
      %v303 = vld [vmem:[%s298 + $0x30] sm:$0xff]
      %v304 = vld [vmem:[%s298 + $0x38] sm:$0xff]
      %v305 = vld [vmem:[%s298 + $0x48] sm:$0xff]
      %v306 = vld [vmem:[%s298 + $0x50] sm:$0xff]
      %v307 = vld [vmem:[%s298 + $0x60] sm:$0xff]
      %v308 = vld [vmem:[%s298 + $0x68] sm:$0xff]
      %v309 = vld [vmem:[%s298 + $0x78] sm:$0xff]
      %v310 = vld [vmem:[%s298 + $0x80] sm:$0xff]
      %v311 = vld [vmem:[%s298 + $0x90] sm:$0xff]
      %v312 = vld [vmem:[%s298 + $0x98] sm:$0xff]
      %v313 = vld [vmem:[%s298 + $0xa8] sm:$0xff]
      %v314 = vld [vmem:[%s298 + $0xb0] sm:$0xff]
      %v315 = vld [vmem:[%s298 + $0x1] sm:$0xff]
      %v316 = vld [vmem:[%s298 + $0x9] sm:$0xff]
      %v317 = vld [vmem:[%s298 + $0x19] sm:$0xff]
      %v318 = vld [vmem:[%s298 + $0x21] sm:$0xff]
      %v319 = vld [vmem:[%s298 + $0x31] sm:$0xff]
      %v320 = vld [vmem:[%s298 + $0x39] sm:$0xff]
      %v321 = vld [vmem:[%s298 + $0x49] sm:$0xff]
      %v322 = vld [vmem:[%s298 + $0x51] sm:$0xff]
      %v323 = vld [vmem:[%s298 + $0x61] sm:$0xff]
      %v324 = vld [vmem:[%s298 + $0x69] sm:$0xff]
      %v325 = vld [vmem:[%s298 + $0x79] sm:$0xff]
      %v326 = vld [vmem:[%s298 + $0x81] sm:$0xff]
      %v327 = vld [vmem:[%s298 + $0x91] sm:$0xff]
      %v328 = vld [vmem:[%s298 + $0x99] sm:$0xff]
      %v329 = vld [vmem:[%s298 + $0xa9] sm:$0xff]
      %v330 = vld [vmem:[%s298 + $0xb1] sm:$0xff]
      %v331 = vld [vmem:[%s298 + $0x2] sm:$0xff]
      %v332 = vld [vmem:[%s298 + $0xa] sm:$0xff]
      %v333 = vld [vmem:[%s298 + $0x1a] sm:$0xff]
      %v334 = vld [vmem:[%s298 + $0x22] sm:$0xff]
      %v335 = vld [vmem:[%s298 + $0x32] sm:$0xff]
      %v336 = vld [vmem:[%s298 + $0x3a] sm:$0xff]
      %v337 = vld [vmem:[%s298 + $0x4a] sm:$0xff]
      %v338 = vld [vmem:[%s298 + $0x52] sm:$0xff]
      %v339 = vld [vmem:[%s298 + $0x62] sm:$0xff]
      %v340 = vld [vmem:[%s298 + $0x6a] sm:$0xff]
      %v341 = vld [vmem:[%s298 + $0x7a] sm:$0xff]
      %v342 = vld [vmem:[%s298 + $0x82] sm:$0xff]
      %v343 = vld [vmem:[%s298 + $0x92] sm:$0xff]
      %v344 = vld [vmem:[%s298 + $0x9a] sm:$0xff]
      %v345 = vld [vmem:[%s298 + $0xaa] sm:$0xff]
      %v346 = vld [vmem:[%s298 + $0xb2] sm:$0xff]
      %363 = vrot.lane.b32.xlu0 %v213, 4
      %v364 = vpop.permute.xlu0 %363
      %365 = vrot.lane.b32.xlu0 %v214, 4
      %v366 = vpop.permute.xlu0 %365
      %367 = vrot.lane.b32.xlu0 %v215, 4
      %v368 = vpop.permute.xlu0 %367
      %369 = vrot.lane.b32.xlu0 %v216, 4
      %v370 = vpop.permute.xlu0 %369
      %371 = vrot.lane.b32.xlu0 %v217, 4
      %v372 = vpop.permute.xlu0 %371
      %373 = vrot.lane.b32.xlu0 %v218, 4
      %v374 = vpop.permute.xlu0 %373
      %375 = vrot.lane.b32.xlu0 %v219, 4
      %v376 = vpop.permute.xlu0 %375
      %377 = vrot.lane.b32.xlu0 %v220, 4
      %v378 = vpop.permute.xlu0 %377
      %379 = vrot.lane.b32.xlu0 %v221, 4
      %v380 = vpop.permute.xlu0 %379
      %381 = vrot.lane.b32.xlu0 %v222, 4
      %v382 = vpop.permute.xlu0 %381
      %383 = vrot.lane.b32.xlu0 %v223, 4
      %v384 = vpop.permute.xlu0 %383
      %385 = vrot.lane.b32.xlu0 %v224, 4
      %v386 = vpop.permute.xlu0 %385
      %387 = vrot.lane.b32.xlu0 %v225, 4
      %v388 = vpop.permute.xlu0 %387
      %389 = vrot.lane.b32.xlu0 %v226, 4
      %v390 = vpop.permute.xlu0 %389
      %391 = vrot.lane.b32.xlu0 %v227, 4
      %v392 = vpop.permute.xlu0 %391
      %393 = vrot.lane.b32.xlu0 %v228, 4
      %v394 = vpop.permute.xlu0 %393
      %427 = vrot.lane.b32.xlu0 %v229, 8
      %v428 = vpop.permute.xlu0 %427
      %429 = vrot.lane.b32.xlu0 %v230, 8
      %v430 = vpop.permute.xlu0 %429
      %431 = vrot.lane.b32.xlu0 %v231, 8
      %v432 = vpop.permute.xlu0 %431
      %433 = vrot.lane.b32.xlu0 %v232, 8
      %v434 = vpop.permute.xlu0 %433
      %435 = vrot.lane.b32.xlu0 %v233, 8
      %v436 = vpop.permute.xlu0 %435
      %437 = vrot.lane.b32.xlu0 %v234, 8
      %v438 = vpop.permute.xlu0 %437
      %439 = vrot.lane.b32.xlu0 %v235, 8
      %v440 = vpop.permute.xlu0 %439
      %441 = vrot.lane.b32.xlu0 %v236, 8
      %v442 = vpop.permute.xlu0 %441
      %443 = vrot.lane.b32.xlu0 %v237, 8
      %v444 = vpop.permute.xlu0 %443
      %445 = vrot.lane.b32.xlu0 %v238, 8
      %v446 = vpop.permute.xlu0 %445
      %447 = vrot.lane.b32.xlu0 %v239, 8
      %v448 = vpop.permute.xlu0 %447
      %449 = vrot.lane.b32.xlu0 %v240, 8
      %v450 = vpop.permute.xlu0 %449
      %451 = vrot.lane.b32.xlu0 %v241, 8
      %v452 = vpop.permute.xlu0 %451
      %453 = vrot.lane.b32.xlu0 %v242, 8
      %v454 = vpop.permute.xlu0 %453
      %455 = vrot.lane.b32.xlu0 %v243, 8
      %v456 = vpop.permute.xlu0 %455
      %457 = vrot.lane.b32.xlu0 %v244, 8
      %v458 = vpop.permute.xlu0 %457
      %491 = vrot.lane.b32.xlu0 %v248, 12
      %v492 = vpop.permute.xlu0 %491
      %493 = vrot.lane.b32.xlu0 %v249, 12
      %v494 = vpop.permute.xlu0 %493
      %495 = vrot.lane.b32.xlu0 %v250, 12
      %v496 = vpop.permute.xlu0 %495
      %497 = vrot.lane.b32.xlu0 %v251, 12
      %v498 = vpop.permute.xlu0 %497
      %499 = vrot.lane.b32.xlu0 %v252, 12
      %v500 = vpop.permute.xlu0 %499
      %501 = vrot.lane.b32.xlu0 %v253, 12
      %v502 = vpop.permute.xlu0 %501
      %503 = vrot.lane.b32.xlu0 %v254, 12
      %v504 = vpop.permute.xlu0 %503
      %505 = vrot.lane.b32.xlu0 %v255, 12
      %v506 = vpop.permute.xlu0 %505
      %507 = vrot.lane.b32.xlu0 %v256, 12
      %v508 = vpop.permute.xlu0 %507
      %509 = vrot.lane.b32.xlu0 %v257, 12
      %v510 = vpop.permute.xlu0 %509
      %511 = vrot.lane.b32.xlu0 %v258, 12
      %v512 = vpop.permute.xlu0 %511
      %513 = vrot.lane.b32.xlu0 %v259, 12
      %v514 = vpop.permute.xlu0 %513
      %515 = vrot.lane.b32.xlu0 %v260, 12
      %v516 = vpop.permute.xlu0 %515
      %517 = vrot.lane.b32.xlu0 %v261, 12
      %v518 = vpop.permute.xlu0 %517
      %519 = vrot.lane.b32.xlu0 %v262, 12
      %v520 = vpop.permute.xlu0 %519
      %521 = vrot.lane.b32.xlu0 %v263, 12
      %v522 = vpop.permute.xlu0 %521
      %555 = vrot.lane.b32.xlu0 %v264, 16
      %v556 = vpop.permute.xlu0 %555
      %557 = vrot.lane.b32.xlu0 %v265, 16
      %v558 = vpop.permute.xlu0 %557
      %559 = vrot.lane.b32.xlu0 %v266, 16
      %v560 = vpop.permute.xlu0 %559
      %561 = vrot.lane.b32.xlu0 %v267, 16
      %v562 = vpop.permute.xlu0 %561
      %563 = vrot.lane.b32.xlu0 %v268, 16
      %v564 = vpop.permute.xlu0 %563
      %565 = vrot.lane.b32.xlu0 %v269, 16
      %v566 = vpop.permute.xlu0 %565
      %567 = vrot.lane.b32.xlu0 %v270, 16
      %v568 = vpop.permute.xlu0 %567
      %569 = vrot.lane.b32.xlu0 %v271, 16
      %v570 = vpop.permute.xlu0 %569
      %571 = vrot.lane.b32.xlu0 %v272, 16
      %v572 = vpop.permute.xlu0 %571
      %573 = vrot.lane.b32.xlu0 %v273, 16
      %v574 = vpop.permute.xlu0 %573
      %575 = vrot.lane.b32.xlu0 %v274, 16
      %v576 = vpop.permute.xlu0 %575
      %577 = vrot.lane.b32.xlu0 %v275, 16
      %v578 = vpop.permute.xlu0 %577
      %579 = vrot.lane.b32.xlu0 %v276, 16
      %v580 = vpop.permute.xlu0 %579
      %581 = vrot.lane.b32.xlu0 %v277, 16
      %v582 = vpop.permute.xlu0 %581
      %583 = vrot.lane.b32.xlu0 %v278, 16
      %v584 = vpop.permute.xlu0 %583
      %585 = vrot.lane.b32.xlu0 %v279, 16
      %v586 = vpop.permute.xlu0 %585
      %619 = vrot.lane.b32.xlu0 %v280, 20
      %v620 = vpop.permute.xlu0 %619
      %621 = vrot.lane.b32.xlu0 %v281, 20
      %v622 = vpop.permute.xlu0 %621
      %623 = vrot.lane.b32.xlu0 %v282, 20
      %v624 = vpop.permute.xlu0 %623
      %625 = vrot.lane.b32.xlu0 %v283, 20
      %v626 = vpop.permute.xlu0 %625
      %627 = vrot.lane.b32.xlu0 %v284, 20
      %v628 = vpop.permute.xlu0 %627
      %629 = vrot.lane.b32.xlu0 %v285, 20
      %v630 = vpop.permute.xlu0 %629
      %631 = vrot.lane.b32.xlu0 %v286, 20
      %v632 = vpop.permute.xlu0 %631
      %633 = vrot.lane.b32.xlu0 %v287, 20
      %v634 = vpop.permute.xlu0 %633
      %635 = vrot.lane.b32.xlu0 %v288, 20
      %v636 = vpop.permute.xlu0 %635
      %637 = vrot.lane.b32.xlu0 %v289, 20
      %v638 = vpop.permute.xlu0 %637
      %639 = vrot.lane.b32.xlu0 %v290, 20
      %v640 = vpop.permute.xlu0 %639
      %641 = vrot.lane.b32.xlu0 %v291, 20
      %v642 = vpop.permute.xlu0 %641
      %643 = vrot.lane.b32.xlu0 %v292, 20
      %v644 = vpop.permute.xlu0 %643
      %645 = vrot.lane.b32.xlu0 %v293, 20
      %v646 = vpop.permute.xlu0 %645
      %647 = vrot.lane.b32.xlu0 %v294, 20
      %v648 = vpop.permute.xlu0 %647
      %649 = vrot.lane.b32.xlu0 %v295, 20
      %v650 = vpop.permute.xlu0 %649
      %683 = vrot.lane.b32.xlu0 %v299, 24
      %v684 = vpop.permute.xlu0 %683
      %685 = vrot.lane.b32.xlu0 %v300, 24
      %v686 = vpop.permute.xlu0 %685
      %687 = vrot.lane.b32.xlu0 %v301, 24
      %v688 = vpop.permute.xlu0 %687
      %689 = vrot.lane.b32.xlu0 %v302, 24
      %v690 = vpop.permute.xlu0 %689
      %691 = vrot.lane.b32.xlu0 %v303, 24
      %v692 = vpop.permute.xlu0 %691
      %693 = vrot.lane.b32.xlu0 %v304, 24
      %v694 = vpop.permute.xlu0 %693
      %695 = vrot.lane.b32.xlu0 %v305, 24
      %v696 = vpop.permute.xlu0 %695
      %697 = vrot.lane.b32.xlu0 %v306, 24
      %v698 = vpop.permute.xlu0 %697
      %699 = vrot.lane.b32.xlu0 %v307, 24
      %v700 = vpop.permute.xlu0 %699
      %701 = vrot.lane.b32.xlu0 %v308, 24
      %v702 = vpop.permute.xlu0 %701
      %703 = vrot.lane.b32.xlu0 %v309, 24
      %v704 = vpop.permute.xlu0 %703
      %705 = vrot.lane.b32.xlu0 %v310, 24
      %v706 = vpop.permute.xlu0 %705
      %707 = vrot.lane.b32.xlu0 %v311, 24
      %v708 = vpop.permute.xlu0 %707
      %709 = vrot.lane.b32.xlu0 %v312, 24
      %v710 = vpop.permute.xlu0 %709
      %711 = vrot.lane.b32.xlu0 %v313, 24
      %v712 = vpop.permute.xlu0 %711
      %713 = vrot.lane.b32.xlu0 %v314, 24
      %v714 = vpop.permute.xlu0 %713
      %747 = vrot.lane.b32.xlu0 %v315, 28
      %v748 = vpop.permute.xlu0 %747
      %749 = vrot.lane.b32.xlu0 %v316, 28
      %v750 = vpop.permute.xlu0 %749
      %751 = vrot.lane.b32.xlu0 %v317, 28
      %v752 = vpop.permute.xlu0 %751
      %753 = vrot.lane.b32.xlu0 %v318, 28
      %v754 = vpop.permute.xlu0 %753
      %755 = vrot.lane.b32.xlu0 %v319, 28
      %v756 = vpop.permute.xlu0 %755
      %757 = vrot.lane.b32.xlu0 %v320, 28
      %v758 = vpop.permute.xlu0 %757
      %759 = vrot.lane.b32.xlu0 %v321, 28
      %v760 = vpop.permute.xlu0 %759
      %761 = vrot.lane.b32.xlu0 %v322, 28
      %v762 = vpop.permute.xlu0 %761
      %763 = vrot.lane.b32.xlu0 %v323, 28
      %v764 = vpop.permute.xlu0 %763
      %765 = vrot.lane.b32.xlu0 %v324, 28
      %v766 = vpop.permute.xlu0 %765
      %767 = vrot.lane.b32.xlu0 %v325, 28
      %v768 = vpop.permute.xlu0 %767
      %769 = vrot.lane.b32.xlu0 %v326, 28
      %v770 = vpop.permute.xlu0 %769
      %771 = vrot.lane.b32.xlu0 %v327, 28
      %v772 = vpop.permute.xlu0 %771
      %773 = vrot.lane.b32.xlu0 %v328, 28
      %v774 = vpop.permute.xlu0 %773
      %775 = vrot.lane.b32.xlu0 %v329, 28
      %v776 = vpop.permute.xlu0 %775
      %777 = vrot.lane.b32.xlu0 %v330, 28
      %v778 = vpop.permute.xlu0 %777
      %811 = vrot.lane.b32.xlu0 %v331, 32
      %v812 = vpop.permute.xlu0 %811
      %813 = vrot.lane.b32.xlu0 %v332, 32
      %v814 = vpop.permute.xlu0 %813
      %815 = vrot.lane.b32.xlu0 %v333, 32
      %v816 = vpop.permute.xlu0 %815
      %817 = vrot.lane.b32.xlu0 %v334, 32
      %v818 = vpop.permute.xlu0 %817
      %819 = vrot.lane.b32.xlu0 %v335, 32
      %v820 = vpop.permute.xlu0 %819
      %821 = vrot.lane.b32.xlu0 %v336, 32
      %v822 = vpop.permute.xlu0 %821
      %823 = vrot.lane.b32.xlu0 %v337, 32
      %v824 = vpop.permute.xlu0 %823
      %825 = vrot.lane.b32.xlu0 %v338, 32
      %v826 = vpop.permute.xlu0 %825
      %827 = vrot.lane.b32.xlu0 %v339, 32
      %v828 = vpop.permute.xlu0 %827
      %829 = vrot.lane.b32.xlu0 %v340, 32
      %v830 = vpop.permute.xlu0 %829
      %831 = vrot.lane.b32.xlu0 %v341, 32
      %v832 = vpop.permute.xlu0 %831
      %833 = vrot.lane.b32.xlu0 %v342, 32
      %v834 = vpop.permute.xlu0 %833
      %835 = vrot.lane.b32.xlu0 %v343, 32
      %v836 = vpop.permute.xlu0 %835
      %837 = vrot.lane.b32.xlu0 %v344, 32
      %v838 = vpop.permute.xlu0 %837
      %839 = vrot.lane.b32.xlu0 %v345, 32
      %v840 = vpop.permute.xlu0 %839
      %841 = vrot.lane.b32.xlu0 %v346, 32
      %v842 = vpop.permute.xlu0 %841
      %vm859 = vcmask 31744
      %v860 = vsel %vm859, %v197, %v364
      %v861 = vsel %vm859, %v198, %v366
      %v862 = vsel %vm859, %v199, %v368
      %v863 = vsel %vm859, %v200, %v370
      %v864 = vsel %vm859, %v201, %v372
      %v865 = vsel %vm859, %v202, %v374
      %v866 = vsel %vm859, %v203, %v376
      %v867 = vsel %vm859, %v204, %v378
      %v868 = vsel %vm859, %v205, %v380
      %v869 = vsel %vm859, %v206, %v382
      %v870 = vsel %vm859, %v207, %v384
      %v871 = vsel %vm859, %v208, %v386
      %v872 = vsel %vm859, %v209, %v388
      %v873 = vsel %vm859, %v210, %v390
      %v874 = vsel %vm859, %v211, %v392
      %v875 = vsel %vm859, %v212, %v394
      %vm876 = vcmask 64512
      %v877 = vsel %vm876, %v860, %v428
      %v878 = vsel %vm876, %v861, %v430
      %v879 = vsel %vm876, %v862, %v432
      %v880 = vsel %vm876, %v863, %v434
      %v881 = vsel %vm876, %v864, %v436
      %v882 = vsel %vm876, %v865, %v438
      %v883 = vsel %vm876, %v866, %v440
      %v884 = vsel %vm876, %v867, %v442
      %v885 = vsel %vm876, %v868, %v444
      %v886 = vsel %vm876, %v869, %v446
      %v887 = vsel %vm876, %v870, %v448
      %v888 = vsel %vm876, %v871, %v450
      %v889 = vsel %vm876, %v872, %v452
      %v890 = vsel %vm876, %v873, %v454
      %v891 = vsel %vm876, %v874, %v456
      %v892 = vsel %vm876, %v875, %v458
      %vm893 = vcmask 97280
      %v894 = vsel %vm893, %v877, %v492
      %v895 = vsel %vm893, %v878, %v494
      %v896 = vsel %vm893, %v879, %v496
      %v897 = vsel %vm893, %v880, %v498
      %v898 = vsel %vm893, %v881, %v500
      %v899 = vsel %vm893, %v882, %v502
      %v900 = vsel %vm893, %v883, %v504
      %v901 = vsel %vm893, %v884, %v506
      %v902 = vsel %vm893, %v885, %v508
      %v903 = vsel %vm893, %v886, %v510
      %v904 = vsel %vm893, %v887, %v512
      %v905 = vsel %vm893, %v888, %v514
      %v906 = vsel %vm893, %v889, %v516
      %v907 = vsel %vm893, %v890, %v518
      %v908 = vsel %vm893, %v891, %v520
      %v909 = vsel %vm893, %v892, %v522
      %vm910 = vcmask 130048
      %v911 = vsel %vm910, %v894, %v556
      %v912 = vsel %vm910, %v895, %v558
      %v913 = vsel %vm910, %v896, %v560
      %v914 = vsel %vm910, %v897, %v562
      %v915 = vsel %vm910, %v898, %v564
      %v916 = vsel %vm910, %v899, %v566
      %v917 = vsel %vm910, %v900, %v568
      %v918 = vsel %vm910, %v901, %v570
      %v919 = vsel %vm910, %v902, %v572
      %v920 = vsel %vm910, %v903, %v574
      %v921 = vsel %vm910, %v904, %v576
      %v922 = vsel %vm910, %v905, %v578
      %v923 = vsel %vm910, %v906, %v580
      %v924 = vsel %vm910, %v907, %v582
      %v925 = vsel %vm910, %v908, %v584
      %v926 = vsel %vm910, %v909, %v586
      %vm927 = vcmask 162816
      %v928 = vsel %vm927, %v911, %v620
      %v929 = vsel %vm927, %v912, %v622
      %v930 = vsel %vm927, %v913, %v624
      %v931 = vsel %vm927, %v914, %v626
      %v932 = vsel %vm927, %v915, %v628
      %v933 = vsel %vm927, %v916, %v630
      %v934 = vsel %vm927, %v917, %v632
      %v935 = vsel %vm927, %v918, %v634
      %v936 = vsel %vm927, %v919, %v636
      %v937 = vsel %vm927, %v920, %v638
      %v938 = vsel %vm927, %v921, %v640
      %v939 = vsel %vm927, %v922, %v642
      %v940 = vsel %vm927, %v923, %v644
      %v941 = vsel %vm927, %v924, %v646
      %v942 = vsel %vm927, %v925, %v648
      %v943 = vsel %vm927, %v926, %v650
      %vm944 = vcmask 195584
      %v945 = vsel %vm944, %v928, %v684
      %v946 = vsel %vm944, %v929, %v686
      %v947 = vsel %vm944, %v930, %v688
      %v948 = vsel %vm944, %v931, %v690
      %v949 = vsel %vm944, %v932, %v692
      %v950 = vsel %vm944, %v933, %v694
      %v951 = vsel %vm944, %v934, %v696
      %v952 = vsel %vm944, %v935, %v698
      %v953 = vsel %vm944, %v936, %v700
      %v954 = vsel %vm944, %v937, %v702
      %v955 = vsel %vm944, %v938, %v704
      %v956 = vsel %vm944, %v939, %v706
      %v957 = vsel %vm944, %v940, %v708
      %v958 = vsel %vm944, %v941, %v710
      %v959 = vsel %vm944, %v942, %v712
      %v960 = vsel %vm944, %v943, %v714
      %vm961 = vcmask 228352
      %v962 = vsel %vm961, %v945, %v748
      %v963 = vsel %vm961, %v946, %v750
      %v964 = vsel %vm961, %v947, %v752
      %v965 = vsel %vm961, %v948, %v754
      %v966 = vsel %vm961, %v949, %v756
      %v967 = vsel %vm961, %v950, %v758
      %v968 = vsel %vm961, %v951, %v760
      %v969 = vsel %vm961, %v952, %v762
      %v970 = vsel %vm961, %v953, %v764
      %v971 = vsel %vm961, %v954, %v766
      %v972 = vsel %vm961, %v955, %v768
      %v973 = vsel %vm961, %v956, %v770
      %v974 = vsel %vm961, %v957, %v772
      %v975 = vsel %vm961, %v958, %v774
      %v976 = vsel %vm961, %v959, %v776
      %v977 = vsel %vm961, %v960, %v778
      %vm978 = vcmask 261120
      %v979 = vsel %vm978, %v962, %v812
      %v980 = vsel %vm978, %v963, %v814
      %v981 = vsel %vm978, %v964, %v816
      %v982 = vsel %vm978, %v965, %v818
      %v983 = vsel %vm978, %v966, %v820
      %v984 = vsel %vm978, %v967, %v822
      %v985 = vsel %vm978, %v968, %v824
      %v986 = vsel %vm978, %v969, %v826
      %v987 = vsel %vm978, %v970, %v828
      %v988 = vsel %vm978, %v971, %v830
      %v989 = vsel %vm978, %v972, %v832
      %v990 = vsel %vm978, %v973, %v834
      %v991 = vsel %vm978, %v974, %v836
      %v992 = vsel %vm978, %v975, %v838
      %v993 = vsel %vm978, %v976, %v840
      %v994 = vsel %vm978, %v977, %v842
      %v995 = vld [vmem:[%s1] sm:$0xff]
      %v996 = vld [vmem:[%s1 + $0x8] sm:$0xff]
      %v997 = vld [vmem:[%s1 + $0x10] sm:$0xff]
      %v998 = vld [vmem:[%s1 + $0x18] sm:$0xff]
      %v999 = vld [vmem:[%s1 + $0x20] sm:$0xf]
      %v1000 = vld [vmem:[%s2] sm:$0x1]
      %v1002 = vlaneseq
      %v1003 = vshrl.u32 %v1002, 7
      %v1004 = vsub.s32 0, %v1003
      %v1005 = vrot.slane %v1000, %v1004
      %vm1007 = vcmask 293888
      %v1009 = vsel %vm1007, %v979, 0
      %v1012 = vsel %vm1007, %v980, 0
      %v1015 = vsel %vm1007, %v981, 0
      %v1018 = vsel %vm1007, %v982, 0
      %v1021 = vsel %vm1007, %v983, 0
      %v1024 = vsel %vm1007, %v984, 0
      %v1027 = vsel %vm1007, %v985, 0
      %v1030 = vsel %vm1007, %v986, 0
      %v1033 = vsel %vm1007, %v987, 0
      %v1036 = vsel %vm1007, %v988, 0
      %v1039 = vsel %vm1007, %v989, 0
      %v1042 = vsel %vm1007, %v990, 0
      %v1045 = vsel %vm1007, %v991, 0
      %v1048 = vsel %vm1007, %v992, 0
      %v1051 = vsel %vm1007, %v993, 0
      %v1054 = vsel %vm1007, %v994, 0
      %vm1056 = vcmask 1043456
      %v1058 = vsel %vm1056, %v999, 0
      %1060 = vmatprep.subr.mxu0 0.0
      %1061 = vmatpush1.msra.mxu0 %v995
      %1062 = vmatprep.subr.mxu0 0.0
      %1063 = vmatpush1.msra.mxu0 %v996
      %1064 = vmatprep.subr.mxu0 0.0
      %1065 = vmatpush1.msra.mxu0 %v997
      %1066 = vmatprep.subr.mxu0 0.0
      %1067 = vmatpush1.msra.mxu0 %v998
      %1068 = vmatprep.subr.mxu0 0.0
      %1069 = vmatpush1.msra.mxu0 %v1058
      %1070 = vmatprep.subr.mxu0 0.0
      %1071 = vmatpush1.msra.mxu0 0.0
      %1072 = vmatprep.subr.mxu0 0.0
      %1073 = vmatpush1.msra.mxu0 0.0
      %1074 = vmatprep.subr.mxu0 0.0
      %1075 = vmatpush1.msra.mxu0 0.0
      %1076 = vmatprep.subr.mxu0 0.0
      %1077 = vmatpush1.msra.mxu0 0.0
      %1078 = vmatprep.subr.mxu0 0.0
      %1079 = vmatpush1.msra.mxu0 0.0
      %1080 = vmatprep.subr.mxu0 0.0
      %1081 = vmatpush1.msra.mxu0 0.0
      %1082 = vmatprep.subr.mxu0 0.0
      %1083 = vmatpush1.msra.mxu0 0.0
      %1084 = vmatprep.subr.mxu0 0.0
      %1085 = vmatpush1.msra.mxu0 0.0
      %1086 = vmatprep.subr.mxu0 0.0
      %1087 = vmatpush1.msra.mxu0 0.0
      %1088 = vmatprep.subr.mxu0 0.0
      %1089 = vmatpush1.msra.mxu0 0.0
      %1090 = vmatprep.subr.mxu0 0.0
      %1091 = vmatpush1.msra.mxu0 0.0
      %1092 = vmatprep.subr.mxu0 0.0
      %1093 = vmatpush1.msra.mxu0 0.0
      %1094 = vmatprep.subr.mxu0 0.0
      %1095 = vmatpush1.msra.mxu0 0.0
      %1096 = vmatprep.subr.mxu0 0.0
      %1097 = vmatpush1.msra.mxu0 0.0
      %1098 = vmatprep.subr.mxu0 0.0
      %1099 = vmatpush1.msra.mxu0 0.0
      %1100 = vmatprep.subr.mxu0 0.0
      %1101 = vmatpush1.msra.mxu0 0.0
      %1102 = vmatprep.subr.mxu0 0.0
      %1103 = vmatpush1.msra.mxu0 0.0
      %1104 = vmatprep.subr.mxu0 0.0
      %1105 = vmatpush1.msra.mxu0 0.0
      %1106 = vmatprep.subr.mxu0 0.0
      %1107 = vmatpush1.msra.mxu0 0.0
      %1108 = vmatprep.subr.mxu0 0.0
      %1109 = vmatpush1.msra.mxu0 0.0
      %1110 = vmatprep.subr.mxu0 0.0
      %1111 = vmatpush1.msra.mxu0 0.0
      %1112 = vmatprep.subr.mxu0 0.0
      %1113 = vmatpush1.msra.mxu0 0.0
      %1114 = vmatprep.subr.mxu0 0.0
      %1115 = vmatpush1.msra.mxu0 0.0
      %1116 = vmatprep.subr.mxu0 0.0
      %1117 = vmatpush1.msra.mxu0 0.0
      %1118 = vmatprep.subr.mxu0 0.0
      %1119 = vmatpush1.msra.mxu0 0.0
      %1120 = vmatprep.subr.mxu0 0.0
      %1121 = vmatpush1.msra.mxu0 0.0
      %1122 = vmatprep.subr.mxu0 0.0
      %1123 = vmatpush1.msra.mxu0 0.0
      %1124 = vmatprep.mubr.f32.mxu0 0.0
      %1125 = vmatmul.mubr.f32.gmra.mrb[0].mxu0 %v1009
      %v1126 = vpop.f32.mrb[0].mxu0
      %v1127 = vadd.f32 %v1005, %v1126
      %v1128 = vpop.f32.mrb[0].mxu0
      %1129 = vmatprep.mubr.f32.mxu0 0.0
      %1130 = vmatmul.mubr.f32.gmra.mrb[0].mxu0 %v1012
      %v1131 = vpop.f32.mrb[0].mxu0
      %v1132 = vadd.f32 %v1005, %v1131
      %v1133 = vpop.f32.mrb[0].mxu0
      %1134 = vmatprep.mubr.f32.mxu0 0.0
      %1135 = vmatmul.mubr.f32.gmra.mrb[0].mxu0 %v1015
      %v1136 = vpop.f32.mrb[0].mxu0
      %v1137 = vadd.f32 %v1005, %v1136
      %v1138 = vpop.f32.mrb[0].mxu0
      %1139 = vmatprep.mubr.f32.mxu0 0.0
      %1140 = vmatmul.mubr.f32.gmra.mrb[0].mxu0 %v1018
      %v1141 = vpop.f32.mrb[0].mxu0
      %v1142 = vadd.f32 %v1005, %v1141
      %v1143 = vpop.f32.mrb[0].mxu0
      %1144 = vmatprep.mubr.f32.mxu0 0.0
      %1145 = vmatmul.mubr.f32.gmra.mrb[0].mxu0 %v1021
      %v1146 = vpop.f32.mrb[0].mxu0
      %v1147 = vadd.f32 %v1005, %v1146
      %v1148 = vpop.f32.mrb[0].mxu0
      %1149 = vmatprep.mubr.f32.mxu0 0.0
      %1150 = vmatmul.mubr.f32.gmra.mrb[0].mxu0 %v1024
      %v1151 = vpop.f32.mrb[0].mxu0
      %v1152 = vadd.f32 %v1005, %v1151
      %v1153 = vpop.f32.mrb[0].mxu0
      %1154 = vmatprep.mubr.f32.mxu0 0.0
      %1155 = vmatmul.mubr.f32.gmra.mrb[0].mxu0 %v1027
      %v1156 = vpop.f32.mrb[0].mxu0
      %v1157 = vadd.f32 %v1005, %v1156
      %v1158 = vpop.f32.mrb[0].mxu0
      %1159 = vmatprep.mubr.f32.mxu0 0.0
      %1160 = vmatmul.mubr.f32.gmra.mrb[0].mxu0 %v1030
      %v1161 = vpop.f32.mrb[0].mxu0
      %v1162 = vadd.f32 %v1005, %v1161
      %v1163 = vpop.f32.mrb[0].mxu0
      %1164 = vmatprep.mubr.f32.mxu0 0.0
      %1165 = vmatmul.mubr.f32.gmra.mrb[0].mxu0 %v1033
      %v1166 = vpop.f32.mrb[0].mxu0
      %v1167 = vadd.f32 %v1005, %v1166
      %v1168 = vpop.f32.mrb[0].mxu0
      %1169 = vmatprep.mubr.f32.mxu0 0.0
      %1170 = vmatmul.mubr.f32.gmra.mrb[0].mxu0 %v1036
      %v1171 = vpop.f32.mrb[0].mxu0
      %v1172 = vadd.f32 %v1005, %v1171
      %v1173 = vpop.f32.mrb[0].mxu0
      %1174 = vmatprep.mubr.f32.mxu0 0.0
      %1175 = vmatmul.mubr.f32.gmra.mrb[0].mxu0 %v1039
      %v1176 = vpop.f32.mrb[0].mxu0
      %v1177 = vadd.f32 %v1005, %v1176
      %v1178 = vpop.f32.mrb[0].mxu0
      %1179 = vmatprep.mubr.f32.mxu0 0.0
      %1180 = vmatmul.mubr.f32.gmra.mrb[0].mxu0 %v1042
      %v1181 = vpop.f32.mrb[0].mxu0
      %v1182 = vadd.f32 %v1005, %v1181
      %v1183 = vpop.f32.mrb[0].mxu0
      %1184 = vmatprep.mubr.f32.mxu0 0.0
      %1185 = vmatmul.mubr.f32.gmra.mrb[0].mxu0 %v1045
      %v1186 = vpop.f32.mrb[0].mxu0
      %v1187 = vadd.f32 %v1005, %v1186
      %v1188 = vpop.f32.mrb[0].mxu0
      %1189 = vmatprep.mubr.f32.mxu0 0.0
      %1190 = vmatmul.mubr.f32.gmra.mrb[0].mxu0 %v1048
      %v1191 = vpop.f32.mrb[0].mxu0
      %v1192 = vadd.f32 %v1005, %v1191
      %v1193 = vpop.f32.mrb[0].mxu0
      %1194 = vmatprep.mubr.f32.mxu0 0.0
      %1195 = vmatmul.mubr.f32.gmra.mrb[0].mxu0 %v1051
      %v1196 = vpop.f32.mrb[0].mxu0
      %v1197 = vadd.f32 %v1005, %v1196
      %v1198 = vpop.f32.mrb[0].mxu0
      %1199 = vmatprep.mubr.f32.mxu0 0.0
      %1200 = vmatmul.mubr.f32.gmra.mrb[0].mxu0 %v1054
      %v1201 = vpop.f32.mrb[0].mxu0
      %v1202 = vadd.f32 %v1005, %v1201
      %v1203 = vpop.f32.mrb[0].mxu0
      %1204 = vdwg.mxu0
      %v1205 = vmax.f32 %v1127, 0.0
      %v1206 = vmax.f32 %v1132, 0.0
      %v1207 = vmax.f32 %v1137, 0.0
      %v1208 = vmax.f32 %v1142, 0.0
      %v1209 = vmax.f32 %v1147, 0.0
      %v1210 = vmax.f32 %v1152, 0.0
      %v1211 = vmax.f32 %v1157, 0.0
      %v1212 = vmax.f32 %v1162, 0.0
      %v1213 = vmax.f32 %v1167, 0.0
      %v1214 = vmax.f32 %v1172, 0.0
      %v1215 = vmax.f32 %v1177, 0.0
      %v1216 = vmax.f32 %v1182, 0.0
      %v1217 = vmax.f32 %v1187, 0.0
      %v1218 = vmax.f32 %v1192, 0.0
      %v1219 = vmax.f32 %v1197, 0.0
      %v1220 = vmax.f32 %v1202, 0.0
      %1221 = vst.msk [vmem:[%s192] sm:$0xff] %vm978, %v1205
      %1222 = vst.msk [vmem:[%s192 + $0x8] sm:$0xff] %vm978, %v1206
      %1223 = vst.msk [vmem:[%s192 + $0x10] sm:$0xff] %vm978, %v1207
      %1224 = vst.msk [vmem:[%s192 + $0x18] sm:$0xff] %vm978, %v1208
      %1225 = vst.msk [vmem:[%s192 + $0x20] sm:$0xff] %vm978, %v1209
      %1226 = vst.msk [vmem:[%s192 + $0x28] sm:$0xff] %vm978, %v1210
      %1227 = vst.msk [vmem:[%s192 + $0x30] sm:$0xff] %vm978, %v1211
      %1228 = vst.msk [vmem:[%s192 + $0x38] sm:$0xff] %vm978, %v1212
      %1229 = vst.msk [vmem:[%s192 + $0x40] sm:$0xff] %vm978, %v1213
      %1230 = vst.msk [vmem:[%s192 + $0x48] sm:$0xff] %vm978, %v1214
      %1231 = vst.msk [vmem:[%s192 + $0x50] sm:$0xff] %vm978, %v1215
      %1232 = vst.msk [vmem:[%s192 + $0x58] sm:$0xff] %vm978, %v1216
      %1233 = vst.msk [vmem:[%s192 + $0x60] sm:$0xff] %vm978, %v1217
      %1234 = vst.msk [vmem:[%s192 + $0x68] sm:$0xff] %vm978, %v1218
      %1235 = vst.msk [vmem:[%s192 + $0x70] sm:$0xff] %vm978, %v1219
      %1236 = vst.msk [vmem:[%s192 + $0x78] sm:$0xff] %vm978, %v1220
      %s1237 = smul.u32 16, %s19
      %p1238 = scmp.lt.s32.totalorder %s18, 1
      %s1239 = scalar_select %p1238, %s18, 1
      %p1240 = scmp.lt.s32.totalorder %s1237, 31
      %s1241 = scalar_select %p1240, %s1237, 31
      %s1242 = smul.addr %s1239, 32
      %s1243 = sadd.s32 %s1241, %s1242
      %s1244 = smul.addr %s1243, 8
      %s1245 = scalar_lea.vmem %s3, %s1244
      // Predicated region
      $region33: #{expansion_unit_forward.1} parent=31 // pred_check
        %p1246 = pneg %p114
      $region34: #{expansion_unit_forward.1} parent=31 // pred_check_branch
        %1248 = sbr.rel (%p1246) target = $region36
      $region35: #{expansion_unit_forward.1} parent=31 // pred_region
        %s1249 = smul.u32 16, %s19
      $region36: #{expansion_unit_forward.1} parent=31 // pred_fallthru
        _
    $region32: #{expansion_unit_forward.1} parent=5 // pred_fallthru
      _
    %p1250 = scmp.le.s32.totalorder 2, %s9
    // Predicated region
    $region37: #{expansion_unit_forward.1} parent=5 // pred_check
      %p1251 = pneg %p1250
    $region38: #{expansion_unit_forward.1} parent=5 // pred_check_branch
      %1253 = sbr.rel (%p1251) target = $region40
    $region39: #{expansion_unit_forward.1} parent=5 // pred_region
      %s1254 = ssub.s32 %s9, 2
      // Predicated region
      $region41: #{expansion_unit_forward.1} parent=39 // pred_check
        %p1255 = pneg %p120
      $region42: #{expansion_unit_forward.1} parent=39 // pred_check_branch
        %1257 = sbr.rel (%p1255) target = $region44
      $region43: #{expansion_unit_forward.1} parent=39 // pred_region
        %s1258 = smul.u32 16, %s21
        %p1259 = scmp.lt.s32.totalorder %s20, 1
        %s1260 = scalar_select %p1259, %s20, 1
        %p1261 = scmp.lt.s32.totalorder %s1258, 31
        %s1262 = scalar_select %p1261, %s1258, 31
        %s1263 = smul.addr %s1260, 32
        %s1264 = sadd.s32 %s1262, %s1263
        %s1265 = smul.addr %s1264, 8
        %s1266 = scalar_lea.vmem %s3, %s1265
      $region44: #{expansion_unit_forward.1} parent=39 // pred_fallthru
        _
    $region40: #{expansion_unit_forward.1} parent=5 // pred_fallthru
      _
  $region6: #{expansion_unit_forward.1} parent=0 // loop_footer
    %s13 = sadd.s32 1, %s9
  $region7: #{expansion_unit_forward.1} parent=0 // loop_footer_branch
    %8 = sbr.rel target = $region3
  $region8: #{expansion_unit_forward.1} parent=0 // loop_exit
    _

</llo_original>
